<compile_context>
chip_gen: v7x
topology: tpu7x:2x2x1
jax: 0.10.0
libtpu: 0.0.40
codegen_flags: <defaults>
</compile_context>

<pallas_src>
import functools

import jax
import jax.numpy as jnp
from jax import lax
from jax.experimental import pallas as pl
from jax.experimental.pallas import tpu as pltpu


def _ce_kernel(x_ref, t_ref, out_ref, *, num_classes, tile_rows, n_valid, need_mask):
    """One grid step: logits (1, C, tr, 128) + targets (1, tr, 128) -> (1,1,1,2) partial."""
    t = t_ref[0]                                            # (tr, 128) int32

    # Pass 1: running max over classes + target-logit gather (lane-dense VPU loop).
    x0 = x_ref[0, 0].astype(jnp.float32)                    # (tr, 128)
    m = x0
    tgt = jnp.where(t == 0, x0, 0.0)

    if num_classes >= 32:
        def pass1(c, carry):
            m_c, tgt_c = carry
            xc = x_ref[0, c].astype(jnp.float32)
            return jnp.maximum(m_c, xc), jnp.where(t == c, xc, tgt_c)
        m, tgt = lax.fori_loop(1, num_classes, pass1, (m, tgt))

        def pass2(c, s_c):
            xc = x_ref[0, c].astype(jnp.float32)
            return s_c + jnp.exp(xc - m)
        s = lax.fori_loop(0, num_classes, pass2, jnp.zeros_like(m))
    else:
        for c in range(1, num_classes):
            xc = x_ref[0, c].astype(jnp.float32)
            m = jnp.maximum(m, xc)
            tgt = jnp.where(t == c, xc, tgt)
        s = jnp.zeros_like(m)
        for c in range(num_classes):
            xc = x_ref[0, c].astype(jnp.float32)
            s = s + jnp.exp(xc - m)

    lse = jnp.log(s) + m                                    # (tr, 128)
    loss = lse - tgt                                        # per-pixel NLL
    # Target class is the argmax iff its logit equals the running max (tie caveat).
    correct = (tgt == m).astype(jnp.float32)

    if need_mask:  # padded pixels (H*W % 128 != 0) and/or ragged last row-tile
        ti = pl.program_id(1)
        row = lax.broadcasted_iota(jnp.int32, loss.shape, 0) + ti * tile_rows
        lane = lax.broadcasted_iota(jnp.int32, loss.shape, 1)
        valid = row * 128 + lane < n_valid
        loss = jnp.where(valid, loss, 0.0)
        correct = jnp.where(valid, correct, 0.0)

    loss_sum = jnp.sum(loss)
    corr_sum = jnp.sum(correct)
    # Pack the two scalars into a single (1,1,1,2) store (one tiny output DMA/step).
    sel = lax.broadcasted_iota(jnp.int32, (1, 2), 1) == 0
    out_ref[...] = jnp.where(sel, loss_sum, corr_sum).reshape(1, 1, 1, 2)


def _tpu_vmem_bytes():
    try:
        info = pltpu.get_tpu_info()
        return int(getattr(info, "vmem_capacity_bytes", 64 << 20))
    except Exception:
        return 64 << 20   # conservative (v7x-sized) fallback


def _choose_tile_rows(n_rows, C, itemsize, B, target_bytes, vmem_clamp, sub):
    """Pixel-rows (of 128 lanes) per tile: ~target_bytes logits slab, multiple of
    `sub`, capped so the double-buffered working set fits and B*n_tiles >= ~8."""
    if n_rows <= sub:
        return n_rows
    rows_budget = max(sub, target_bytes // max(1, C * 128 * itemsize))
    # Keep enough grid steps to pipeline DMAs and feed both TensorCores on v7x.
    want_tiles = max(1, -(-8 // max(1, B)))                     # ceil(8 / B)
    rows_steps = max(sub, -(-n_rows // want_tiles))             # ceil(n_rows / want_tiles)
    # Working-set cap: double-buffered logits+targets + ~12 f32 intermediates.
    bytes_per_row = 128 * (2 * C * itemsize + 2 * 4 + 12 * 4)
    rows_vmem = max(sub, (vmem_clamp // 2) // bytes_per_row)
    rows = min(rows_budget, rows_steps, rows_vmem)
    rows = max(sub, (rows // sub) * sub)
    return n_rows if rows >= n_rows else rows


def cross_entropy_loss(outputs, targets, tile_rows=None):
    """Mirrors CrossEntropyLoss.forward: returns (mean loss, accuracy %)."""
    B, C, H, W = outputs.shape
    P = H * W
    N = B * P

    itemsize = jnp.dtype(outputs.dtype).itemsize
    sub = 16 if itemsize < 4 else 8                         # bf16 wants (16, 128) tiles

    # Flatten the spatial plane to 128-lane-dense pixel rows. Metadata-only when
    # H*W % 128 == 0; otherwise a single pad copy of the flat pixel axis.
    x = outputs.reshape(B, C, P)
    t = targets.astype(jnp.int32).reshape(B, P)
    pad = (-P) % 128
    if pad:
        x = jnp.pad(x, ((0, 0), (0, 0), (0, pad)))
        t = jnp.pad(t, ((0, 0), (0, pad)))
    n_rows = (P + pad) // 128
    x = x.reshape(B, C, n_rows, 128)
    t = t.reshape(B, n_rows, 128)

    vmem_cap = _tpu_vmem_bytes()
    small_vmem = vmem_cap <= (64 << 20)                     # v7x: 64 MiB / TC
    target_bytes = (2 << 20) if small_vmem else (4 << 20)   # logits slab per tile
    vmem_clamp = (40 << 20) if small_vmem else (64 << 20)

    if tile_rows is None:
        tile_rows = _choose_tile_rows(n_rows, C, itemsize, B, target_bytes,
                                      vmem_clamp, sub)
    n_tiles = pl.cdiv(n_rows, tile_rows)
    need_mask = (pad != 0) or (n_rows % tile_rows != 0)

    kernel = functools.partial(_ce_kernel, num_classes=C, tile_rows=tile_rows,
                               n_valid=P, need_mask=need_mask)

    # Explicit VMEM budget: double-buffered inputs + f32 intermediates + slack,
    # clamped generation-aware (v7x has only 64 MiB physical VMEM per TensorCore).
    in_tile = C * tile_rows * 128 * itemsize
    tgt_tile = tile_rows * 128 * 4
    interm = 12 * tile_rows * 128 * 4
    vmem_limit = int(min(max(2 * (in_tile + tgt_tile) + interm + (2 << 20), 16 << 20),
                         vmem_clamp))

    parts = pl.pallas_call(
        kernel,
        out_shape=jax.ShapeDtypeStruct((B, n_tiles, 1, 2), jnp.float32),
        grid_spec=pltpu.PrefetchScalarGridSpec(
            num_scalar_prefetch=0,
            grid=(B, n_tiles),
            in_specs=[
                pl.BlockSpec((1, C, tile_rows, 128), lambda b, i: (b, 0, i, 0)),
                pl.BlockSpec((1, tile_rows, 128), lambda b, i: (b, i, 0)),
            ],
            out_specs=pl.BlockSpec((1, 1, 1, 2), lambda b, i: (b, i, 0, 0)),
        ),
        compiler_params=pltpu.CompilerParams(
            dimension_semantics=("parallel", "parallel"),
            vmem_limit_bytes=vmem_limit,
        ),
    )(x, t)

    # TODO(synk): for N >> 2^24 pixels these float32 partial sums can lose exactness.
    loss = jnp.sum(parts[..., 0]) / N
    accuracy = jnp.sum(parts[..., 1]) / N * 100.0
    return loss, accuracy


def _reference(outputs, targets):
    """Pure-JAX reference of the PyTorch forward."""
    logp = jax.nn.log_softmax(outputs.astype(jnp.float32), axis=1)  # (B,C,H,W)
    t = targets.astype(jnp.int32)
    nll = -jnp.take_along_axis(logp, t[:, None, :, :], axis=1)[:, 0]
    loss = nll.mean()
    pred = jnp.argmax(outputs, axis=1)
    acc = (pred == t).mean() * 100.0
    return loss, acc


if __name__ == "__main__":
    key = jax.random.PRNGKey(0)
    k1, k2, k3, k4, k5, k6 = jax.random.split(key, 6)

    # Main test: shapes implied by the module (B, C, H, W) + integer labels (B, H, W).
    B, C, H, W = 2, 4, 16, 16
    outputs = jax.random.normal(k1, (B, C, H, W), dtype=jnp.float32)
    targets = jax.random.randint(k2, (B, H, W), 0, C, dtype=jnp.int32)
    loss, acc = jax.block_until_ready(cross_entropy_loss(outputs, targets))
    ref_loss, ref_acc = _reference(outputs, targets)
    assert jnp.allclose(loss, ref_loss, rtol=1e-5, atol=1e-5), (loss, ref_loss)
    assert jnp.allclose(acc, ref_acc, rtol=1e-5, atol=1e-5), (acc, ref_acc)

    # Ragged row-tile path: H*W/128 = 12 rows, forced tile_rows=8 -> last tile masked.
    B2, C2, H2, W2 = 1, 5, 48, 32
    outputs2 = jax.random.normal(k3, (B2, C2, H2, W2), dtype=jnp.float32)
    targets2 = jax.random.randint(k4, (B2, H2, W2), 0, C2, dtype=jnp.int32)
    loss2, acc2 = jax.block_until_ready(
        cross_entropy_loss(outputs2, targets2, tile_rows=8))
    ref_loss2, ref_acc2 = _reference(outputs2, targets2)
    assert jnp.allclose(loss2, ref_loss2, rtol=1e-5, atol=1e-5), (loss2, ref_loss2)
    assert jnp.allclose(acc2, ref_acc2, rtol=1e-5, atol=1e-5), (acc2, ref_acc2)

    # Non-128-multiple pixel count: H*W=200 -> padded to 256, padded pixels masked.
    B3, C3, H3, W3 = 1, 3, 10, 20
    outputs3 = jax.random.normal(k5, (B3, C3, H3, W3), dtype=jnp.float32)
    targets3 = jax.random.randint(k6, (B3, H3, W3), 0, C3, dtype=jnp.int32)
    loss3, acc3 = jax.block_until_ready(cross_entropy_loss(outputs3, targets3))
    ref_loss3, ref_acc3 = _reference(outputs3, targets3)
    assert jnp.allclose(loss3, ref_loss3, rtol=1e-5, atol=1e-5), (loss3, ref_loss3)
    assert jnp.allclose(acc3, ref_acc3, rtol=1e-5, atol=1e-5), (acc3, ref_acc3)

    print("KERNEL_OK")
</pallas_src>

<mosaic_0001>
module attributes {stable_mosaic.version = 11 : i64} {
  func.func @_ce_kernel(%arg0: i32, %arg1: i32, %arg2: memref<1x4x2x128xf32, #tpu.memory_space<vmem>>, %arg3: memref<1x2x128xi32, #tpu.memory_space<vmem>>, %arg4: memref<1x1x1x2xf32, #tpu.memory_space<vmem>>) attributes {dimension_semantics = [#tpu.dimension_semantics<parallel>, #tpu.dimension_semantics<parallel>], iteration_bounds = array<i64: 2, 1>, scalar_prefetch = 0 : i64, scratch_operands = 0 : i64, tpu.core_type = #tpu.core_type<tc>, window_params = [{transform_indices = @transform_0, window_bounds = array<i64: 1, 4, 2, 128>}, {transform_indices = @transform_1, window_bounds = array<i64: 1, 2, 128>}, {transform_indices = @transform_2, window_bounds = array<i64: 1, 1, 1, 2>}]} {
    %c0 = arith.constant 0 : index
    %c0_0 = arith.constant 0 : index
    %c0_1 = arith.constant 0 : index
    %0 = vector.load %arg3[%c0, %c0_0, %c0_1] : memref<1x2x128xi32, #tpu.memory_space<vmem>>, vector<1x2x128xi32>
    %1 = vector.shape_cast %0 : vector<1x2x128xi32> to vector<2x128xi32>
    %c0_2 = arith.constant 0 : index
    %c0_3 = arith.constant 0 : index
    %c0_4 = arith.constant 0 : index
    %c0_5 = arith.constant 0 : index
    %2 = vector.load %arg2[%c0_2, %c0_3, %c0_4, %c0_5] : memref<1x4x2x128xf32, #tpu.memory_space<vmem>>, vector<1x1x2x128xf32>
    %3 = vector.shape_cast %2 : vector<1x1x2x128xf32> to vector<2x128xf32>
    %c0_i32 = arith.constant 0 : i32
    %4 = vector.broadcast %c0_i32 : i32 to vector<2x128xi32>
    %5 = arith.cmpi eq, %1, %4 : vector<2x128xi32>
    %cst = arith.constant 0.000000e+00 : f32
    %6 = vector.broadcast %cst : f32 to vector<2x128xf32>
    %7 = arith.select %5, %3, %6 : vector<2x128xi1>, vector<2x128xf32>
    %c0_6 = arith.constant 0 : index
    %c1 = arith.constant 1 : index
    %c0_7 = arith.constant 0 : index
    %c0_8 = arith.constant 0 : index
    %8 = vector.load %arg2[%c0_6, %c1, %c0_7, %c0_8] : memref<1x4x2x128xf32, #tpu.memory_space<vmem>>, vector<1x1x2x128xf32>
    %9 = vector.shape_cast %8 : vector<1x1x2x128xf32> to vector<2x128xf32>
    %10 = arith.maximumf %3, %9 : vector<2x128xf32>
    %c1_i32 = arith.constant 1 : i32
    %11 = vector.broadcast %c1_i32 : i32 to vector<2x128xi32>
    %12 = arith.cmpi eq, %1, %11 : vector<2x128xi32>
    %13 = arith.select %12, %9, %7 : vector<2x128xi1>, vector<2x128xf32>
    %c0_9 = arith.constant 0 : index
    %c2 = arith.constant 2 : index
    %c0_10 = arith.constant 0 : index
    %c0_11 = arith.constant 0 : index
    %14 = vector.load %arg2[%c0_9, %c2, %c0_10, %c0_11] : memref<1x4x2x128xf32, #tpu.memory_space<vmem>>, vector<1x1x2x128xf32>
    %15 = vector.shape_cast %14 : vector<1x1x2x128xf32> to vector<2x128xf32>
    %16 = arith.maximumf %10, %15 : vector<2x128xf32>
    %c2_i32 = arith.constant 2 : i32
    %17 = vector.broadcast %c2_i32 : i32 to vector<2x128xi32>
    %18 = arith.cmpi eq, %1, %17 : vector<2x128xi32>
    %19 = arith.select %18, %15, %13 : vector<2x128xi1>, vector<2x128xf32>
    %c0_12 = arith.constant 0 : index
    %c3 = arith.constant 3 : index
    %c0_13 = arith.constant 0 : index
    %c0_14 = arith.constant 0 : index
    %20 = vector.load %arg2[%c0_12, %c3, %c0_13, %c0_14] : memref<1x4x2x128xf32, #tpu.memory_space<vmem>>, vector<1x1x2x128xf32>
    %21 = vector.shape_cast %20 : vector<1x1x2x128xf32> to vector<2x128xf32>
    %22 = arith.maximumf %16, %21 : vector<2x128xf32>
    %c3_i32 = arith.constant 3 : i32
    %23 = vector.broadcast %c3_i32 : i32 to vector<2x128xi32>
    %24 = arith.cmpi eq, %1, %23 : vector<2x128xi32>
    %25 = arith.select %24, %21, %19 : vector<2x128xi1>, vector<2x128xf32>
    %cst_15 = arith.constant 0.000000e+00 : f32
    %26 = vector.broadcast %cst_15 : f32 to vector<2x128xf32>
    %c0_16 = arith.constant 0 : index
    %c0_17 = arith.constant 0 : index
    %c0_18 = arith.constant 0 : index
    %c0_19 = arith.constant 0 : index
    %27 = vector.load %arg2[%c0_16, %c0_17, %c0_18, %c0_19] : memref<1x4x2x128xf32, #tpu.memory_space<vmem>>, vector<1x1x2x128xf32>
    %28 = vector.shape_cast %27 : vector<1x1x2x128xf32> to vector<2x128xf32>
    %29 = arith.subf %28, %22 : vector<2x128xf32>
    %30 = math.exp %29 : vector<2x128xf32>
    %31 = arith.addf %26, %30 : vector<2x128xf32>
    %c0_20 = arith.constant 0 : index
    %c1_21 = arith.constant 1 : index
    %c0_22 = arith.constant 0 : index
    %c0_23 = arith.constant 0 : index
    %32 = vector.load %arg2[%c0_20, %c1_21, %c0_22, %c0_23] : memref<1x4x2x128xf32, #tpu.memory_space<vmem>>, vector<1x1x2x128xf32>
    %33 = vector.shape_cast %32 : vector<1x1x2x128xf32> to vector<2x128xf32>
    %34 = arith.subf %33, %22 : vector<2x128xf32>
    %35 = math.exp %34 : vector<2x128xf32>
    %36 = arith.addf %31, %35 : vector<2x128xf32>
    %c0_24 = arith.constant 0 : index
    %c2_25 = arith.constant 2 : index
    %c0_26 = arith.constant 0 : index
    %c0_27 = arith.constant 0 : index
    %37 = vector.load %arg2[%c0_24, %c2_25, %c0_26, %c0_27] : memref<1x4x2x128xf32, #tpu.memory_space<vmem>>, vector<1x1x2x128xf32>
    %38 = vector.shape_cast %37 : vector<1x1x2x128xf32> to vector<2x128xf32>
    %39 = arith.subf %38, %22 : vector<2x128xf32>
    %40 = math.exp %39 : vector<2x128xf32>
    %41 = arith.addf %36, %40 : vector<2x128xf32>
    %c0_28 = arith.constant 0 : index
    %c3_29 = arith.constant 3 : index
    %c0_30 = arith.constant 0 : index
    %c0_31 = arith.constant 0 : index
    %42 = vector.load %arg2[%c0_28, %c3_29, %c0_30, %c0_31] : memref<1x4x2x128xf32, #tpu.memory_space<vmem>>, vector<1x1x2x128xf32>
    %43 = vector.shape_cast %42 : vector<1x1x2x128xf32> to vector<2x128xf32>
    %44 = arith.subf %43, %22 : vector<2x128xf32>
    %45 = math.exp %44 : vector<2x128xf32>
    %46 = arith.addf %41, %45 : vector<2x128xf32>
    %47 = math.log %46 : vector<2x128xf32>
    %48 = arith.addf %47, %22 : vector<2x128xf32>
    %49 = arith.subf %48, %25 : vector<2x128xf32>
    %50 = arith.cmpf oeq, %25, %22 : vector<2x128xf32>
    %51 = arith.extui %50 : vector<2x128xi1> to vector<2x128xi32>
    %52 = arith.sitofp %51 : vector<2x128xi32> to vector<2x128xf32>
    %53 = vector.shape_cast %49 : vector<2x128xf32> to vector<1x2x128xf32>
    %cst_32 = arith.constant dense<0.000000e+00> : vector<1xf32>
    %54 = vector.multi_reduction <add>, %53, %cst_32 [1, 2] : vector<1x2x128xf32> to vector<1xf32>
    %55 = vector.shape_cast %54 : vector<1xf32> to vector<1x1x1xf32>
    %56 = vector.extract %55[0, 0, 0] : f32 from vector<1x1x1xf32>
    %57 = vector.shape_cast %52 : vector<2x128xf32> to vector<1x2x128xf32>
    %cst_33 = arith.constant dense<0.000000e+00> : vector<1xf32>
    %58 = vector.multi_reduction <add>, %57, %cst_33 [1, 2] : vector<1x2x128xf32> to vector<1xf32>
    %59 = vector.shape_cast %58 : vector<1xf32> to vector<1x1x1xf32>
    %60 = vector.extract %59[0, 0, 0] : f32 from vector<1x1x1xf32>
    %61 = tpu.iota {dimensions = array<i32: 1>} : vector<1x2xi32>
    %c0_i32_34 = arith.constant 0 : i32
    %62 = vector.broadcast %c0_i32_34 : i32 to vector<1x2xi32>
    %63 = arith.cmpi eq, %61, %62 : vector<1x2xi32>
    %64 = vector.broadcast %56 : f32 to vector<1x2xf32>
    %65 = vector.broadcast %60 : f32 to vector<1x2xf32>
    %66 = arith.select %63, %64, %65 : vector<1x2xi1>, vector<1x2xf32>
    %67 = vector.shape_cast %66 : vector<1x2xf32> to vector<1x1x1x2xf32>
    %c0_35 = arith.constant 0 : index
    %c0_36 = arith.constant 0 : index
    %c0_37 = arith.constant 0 : index
    %c0_38 = arith.constant 0 : index
    %68 = vector.load %arg4[%c0_35, %c0_36, %c0_37, %c0_38] : memref<1x1x1x2xf32, #tpu.memory_space<vmem>>, vector<1x1x1x2xf32>
    tpu.vector_store %arg4[%c0_35, %c0_36, %c0_37, %c0_38], %67 {strides = array<i32>} : memref<1x1x1x2xf32, #tpu.memory_space<vmem>>, vector<1x1x1x2xf32>,
    return
  }
  func.func @transform_0(%arg0: i32, %arg1: i32) -> (i32, i32, i32, i32) {
    %c0_i32 = arith.constant 0 : i32
    %c0_i32_0 = arith.constant 0 : i32
    %c0_i32_1 = arith.constant 0 : i32
    return %arg0, %c0_i32, %arg1, %c0_i32_0 : i32, i32, i32, i32
  }
  func.func @transform_1(%arg0: i32, %arg1: i32) -> (i32, i32, i32) {
    %c0_i32 = arith.constant 0 : i32
    %c0_i32_0 = arith.constant 0 : i32
    return %arg0, %arg1, %c0_i32 : i32, i32, i32
  }
  func.func @transform_2(%arg0: i32, %arg1: i32) -> (i32, i32, i32, i32) {
    %c0_i32 = arith.constant 0 : i32
    %c0_i32_0 = arith.constant 0 : i32
    %c0_i32_1 = arith.constant 0 : i32
    return %arg0, %arg1, %c0_i32, %c0_i32_0 : i32, i32, i32, i32
  }
}

</mosaic_0001>

<llo_original>
// kernel: tpu_custom_call.1
$region0: #{tpu_custom_call.1}
  #allocation0 [shape = 'u32[]', space=smem, size = 0x4, offset = 0x4, fixed_abs, tag = 'smem constant byte address 0x4 - core index']
  #allocation1 [shape = 'u32[144,128]{1,0:T(1,128)}', space=vmem, size = 0x12000, scoped, tag = 'internal scratch']
  %s0 = inlined_call_operand.hbm [shape: f32[2,4,2,128], index: 0, kind: input, shape index: {}]
  %s1 = inlined_call_operand.hbm [shape: s32[2,2,128], index: 1, kind: input, shape index: {}]
  %s2 = inlined_call_operand.hbm [shape: f32[2,1,1,2], index: 2, kind: output, shape index: {}]
  %s3 = sld [smem:[#allocation0]]
  $region49: #{tpu_custom_call.1} parent=0
    _
  %s5 = ssub.s32 1, %s3
  %s6 = scalar_select 0, %s5, %s3
  $region1: #{tpu_custom_call.1} parent=0
    #allocation2 [shape = 'u8[8192]{0}', space=vmem, size = 0x2000, scoped, tag = 'input window, operand 0']
    #allocation3 [shape = 's32[2]{0}', space=sflag, size = 0x8, scoped, tag = 'scoped memory for tpu_custom_call.1']
    #allocation4 [shape = 's32[2]{0}', space=sflag, size = 0x8, scoped, tag = 'scoped memory for tpu_custom_call.1']
    #allocation5 [shape = 'u8[2048]{0}', space=vmem, size = 0x800, scoped, tag = 'input window, operand 1']
    #allocation6 [shape = 's32[2]{0}', space=sflag, size = 0x8, scoped, tag = 'scoped memory for tpu_custom_call.1']
    #allocation7 [shape = 'u8[1024]{0}', space=vmem, size = 0x400, scoped, tag = 'output window, operand 0']
    %7 = vsyncpa [#allocation3], 0
    %s8 = scalar_lea.sflag [#allocation3], 1
    %9 = vsyncpa %s8, 0
    %10 = vsyncpa [#allocation6], 0
    %s11 = scalar_lea.sflag [#allocation6], 1
    %12 = vsyncpa %s11, 0
    %13 = vsyncpa [#allocation4], 0
    %s14 = scalar_lea.sflag [#allocation4], 1
    %15 = vsyncpa %s14, 0
    loop: start=0, step=1, limit=4
    $region2: #{tpu_custom_call.1} parent=1 // loop_pre_header
      _
    $region3: #{tpu_custom_call.1} parent=1 // loop_header
      %s17 = sphi 0, %s21
      %p18 = scmp.ge.s32.totalorder %s17, 4
      %s24 = sphi 0, %s36
      %s25 = sphi 0, %s32
      %s26 = sphi 0, %s24
      %s27 = sphi 0, %s25
      %s28 = sphi 0, %s26
      %s29 = sphi 0, %s27
      %s41 = sphi 0, %s43
      %s44 = sphi 0, %s41
      %s45 = sphi 0, %s44
      %s61 = sphi 0, %s45
      %s69 = sphi 0, %s71
      %s72 = sphi 0, %s69
      %s73 = sphi 0, %s72
      %s89 = sphi 0, %s73
      %s97 = sphi 0, %s99
      %s100 = sphi 0, %s97
      %s101 = sphi 0, %s100
      %s117 = sphi 0, %s101
    $region4: #{tpu_custom_call.1} parent=1 // loop_header_branch
      %20 = sbr.rel (%p18) target = $region8
    $region5: #{tpu_custom_call.1} parent=1 // loop_body
      %s22 = ssub.s32 %s17, 1
      %s23 = ssub.s32 %s17, 2
      %s30 = sadd.s32 1, %s25
      %p31 = scmp.ge.s32.totalorder %s30, 1
      %s32 = scalar_select %p31, 0, %s30
      %s33 = sadd.s32 1, %s24
      %s34 = scalar_select %p31, %s33, %s24
      %p35 = scmp.ge.s32.totalorder %s34, 2
      %s36 = scalar_select %p35, 0, %s34
      %s37 = ssub.s32 %s24, %s36
      %s38 = ssub.s32 %s25, %s32
      %s39 = sor.u32 %s37, %s38
      %p40 = scmp.eq.s32.totalorder %s39, 0
      %s42 = sadd.s32 %s41, 1
      %s43 = scalar_select %p40, %s41, %s42
      %p46 = pneg %p40
      %p47 = scmp.eq.s32.totalorder %s17, 1
      %p48 = por %p46, %p47
      %p49 = scmp.ne.s32.totalorder %s41, %s44
      %p50 = scmp.eq.s32.totalorder %s17, 0
      %p51 = por %p49, %p50
      %p52 = scmp.ne.s32.totalorder %s41, %s44
      %p53 = scmp.eq.s32.totalorder %s22, 1
      %p54 = por %p52, %p53
      %p55 = scmp.ne.s32.totalorder %s44, %s45
      %p56 = scmp.eq.s32.totalorder %s22, 0
      %p57 = por %p55, %p56
      %p58 = scmp.ne.s32.totalorder %s44, %s45
      %p59 = scmp.eq.s32.totalorder %s23, 1
      %p60 = por %p58, %p59
      %p62 = scmp.ne.s32.totalorder %s45, %s61
      %p63 = scmp.eq.s32.totalorder %s23, 0
      %p64 = por %p62, %p63
      %s65 = ssub.s32 %s24, %s36
      %s66 = ssub.s32 %s25, %s32
      %s67 = sor.u32 %s65, %s66
      %p68 = scmp.eq.s32.totalorder %s67, 0
      %s70 = sadd.s32 %s69, 1
      %s71 = scalar_select %p68, %s69, %s70
      %p74 = pneg %p68
      %p75 = scmp.eq.s32.totalorder %s17, 1
      %p76 = por %p74, %p75
      %p77 = scmp.ne.s32.totalorder %s69, %s72
      %p78 = scmp.eq.s32.totalorder %s17, 0
      %p79 = por %p77, %p78
      %p80 = scmp.ne.s32.totalorder %s69, %s72
      %p81 = scmp.eq.s32.totalorder %s22, 1
      %p82 = por %p80, %p81
      %p83 = scmp.ne.s32.totalorder %s72, %s73
      %p84 = scmp.eq.s32.totalorder %s22, 0
      %p85 = por %p83, %p84
      %p86 = scmp.ne.s32.totalorder %s72, %s73
      %p87 = scmp.eq.s32.totalorder %s23, 1
      %p88 = por %p86, %p87
      %p90 = scmp.ne.s32.totalorder %s73, %s89
      %p91 = scmp.eq.s32.totalorder %s23, 0
      %p92 = por %p90, %p91
      %s93 = ssub.s32 %s24, %s36
      %s94 = ssub.s32 %s25, %s32
      %s95 = sor.u32 %s93, %s94
      %p96 = scmp.eq.s32.totalorder %s95, 0
      %s98 = sadd.s32 %s97, 1
      %s99 = scalar_select %p96, %s97, %s98
      %p102 = pneg %p96
      %p103 = scmp.eq.s32.totalorder %s17, 1
      %p104 = por %p102, %p103
      %p105 = scmp.ne.s32.totalorder %s97, %s100
      %p106 = scmp.eq.s32.totalorder %s17, 0
      %p107 = por %p105, %p106
      %p108 = scmp.ne.s32.totalorder %s97, %s100
      %p109 = scmp.eq.s32.totalorder %s22, 1
      %p110 = por %p108, %p109
      %p111 = scmp.ne.s32.totalorder %s100, %s101
      %p112 = scmp.eq.s32.totalorder %s22, 0
      %p113 = por %p111, %p112
      %p114 = scmp.ne.s32.totalorder %s100, %s101
      %p115 = scmp.eq.s32.totalorder %s23, 1
      %p116 = por %p114, %p115
      %p118 = scmp.ne.s32.totalorder %s101, %s117
      %p119 = scmp.eq.s32.totalorder %s23, 0
      %p120 = por %p118, %p119
      %p121 = scmp.le.s32.totalorder 1, %s17
      %p122 = scmp.lt.s32.totalorder %s17, 3
      %p123 = pnand %p121, %p122
      %p124 = pneg %p123
      // Predicated region
      $region9: #{tpu_custom_call.1} parent=5 // pred_check
        _
      $region10: #{tpu_custom_call.1} parent=5 // pred_check_branch
        %126 = sbr.rel (%p123) target = $region12
      $region11: #{tpu_custom_call.1} parent=5 // pred_region
        %s127 = ssub.s32 %s17, 1
      $region12: #{tpu_custom_call.1} parent=5 // pred_fallthru
        _
      %p128 = scmp.lt.s32.totalorder %s17, 2
      // Predicated region
      $region13: #{tpu_custom_call.1} parent=5 // pred_check
        %p129 = pneg %p128
      $region14: #{tpu_custom_call.1} parent=5 // pred_check_branch
        %131 = sbr.rel (%p129) target = $region16
      $region15: #{tpu_custom_call.1} parent=5 // pred_region
        // Predicated region
        $region17: #{tpu_custom_call.1} parent=15 // pred_check
          %p132 = pneg %p51
        $region18: #{tpu_custom_call.1} parent=15 // pred_check_branch
          %134 = sbr.rel (%p132) target = $region20
        $region19: #{tpu_custom_call.1} parent=15 // pred_region
          %s135 = sand.u32 %s41, 1
          %s136 = scalar_lea.sflag [#allocation3], %s135
          %s137 = sand.u32 %s41, 1
          %s138 = smul.addr %s137, 8
          %s139 = scalar_lea.vmem [#allocation2], %s138
          %s141 = ssub.s32 128, 128
          %142 = vsyncadd %s136, %s141
          %s143 = smul.addr %s24, 4
          %s144 = sadd.s32 %s25, %s143
          %s145 = smul.addr %s144, 32
          %s146 = scalar_lea.hbm %s0, %s145
          %s147 = sshll.u32 %s139, 4
          %s148 = int_to_ptr.vmem [resolvable:$true] %s147
          %153 = dma.hbm_to_vmem [thread:$0]  %s146, 128, %s148, %s136, 32, 32, 2
        $region20: #{tpu_custom_call.1} parent=15 // pred_fallthru
          _
        // Predicated region
        $region21: #{tpu_custom_call.1} parent=15 // pred_check
          %p154 = pneg %p79
        $region22: #{tpu_custom_call.1} parent=15 // pred_check_branch
          %156 = sbr.rel (%p154) target = $region24
        $region23: #{tpu_custom_call.1} parent=15 // pred_region
          %s157 = sand.u32 %s69, 1
          %s158 = scalar_lea.sflag [#allocation6], %s157
          %s159 = sand.u32 %s69, 1
          %s160 = smul.addr %s159, 2
          %s161 = scalar_lea.vmem [#allocation5], %s160
          %s163 = ssub.s32 32, 32
          %164 = vsyncadd %s158, %s163
          %s165 = sadd.s32 %s25, %s24
          %s166 = smul.addr %s165, 32
          %s167 = scalar_lea.hbm %s1, %s166
          %s169 = sshll.u32 %s161, 4
          %s170 = int_to_ptr.vmem [resolvable:$true] %s169
          %172 = dma.hbm_to_vmem [thread:$0]  %s167, 32, %s170, %s158
        $region24: #{tpu_custom_call.1} parent=15 // pred_fallthru
          _
      $region16: #{tpu_custom_call.1} parent=5 // pred_fallthru
        _
      %p173 = scmp.le.s32.totalorder 1, %s17
      %p174 = scmp.lt.s32.totalorder %s17, 3
      %p175 = pnand %p173, %p174
      %p176 = pneg %p175
      // Predicated region
      $region25: #{tpu_custom_call.1} parent=5 // pred_check
        _
      $region26: #{tpu_custom_call.1} parent=5 // pred_check_branch
        %178 = sbr.rel (%p175) target = $region28
      $region27: #{tpu_custom_call.1} parent=5 // pred_region
        %s179 = ssub.s32 %s17, 1
        %s180 = sand.u32 %s44, 1
        %s181 = scalar_lea.sflag [#allocation3], %s180
        %s182 = sand.u32 %s44, 1
        %s183 = smul.addr %s182, 8
        %s184 = scalar_lea.vmem [#allocation2], %s183
        // Predicated region
        $region29: #{tpu_custom_call.1} parent=27 // pred_check
          %p185 = pneg %p57
        $region30: #{tpu_custom_call.1} parent=27 // pred_check_branch
          %187 = sbr.rel (%p185) target = $region32
        $region31: #{tpu_custom_call.1} parent=27 // pred_region
          %188 = dma.done %s181, 128
        $region32: #{tpu_custom_call.1} parent=27 // pred_fallthru
          _
        %s189 = sand.u32 %s72, 1
        %s190 = scalar_lea.sflag [#allocation6], %s189
        %s191 = sand.u32 %s72, 1
        %s192 = smul.addr %s191, 2
        %s193 = scalar_lea.vmem [#allocation5], %s192
        // Predicated region
        $region33: #{tpu_custom_call.1} parent=27 // pred_check
          %p194 = pneg %p85
        $region34: #{tpu_custom_call.1} parent=27 // pred_check_branch
          %196 = sbr.rel (%p194) target = $region36
        $region35: #{tpu_custom_call.1} parent=27 // pred_region
          %197 = dma.done %s190, 32
        $region36: #{tpu_custom_call.1} parent=27 // pred_fallthru
          _
        %s198 = sand.u32 %s44, 1
        %s199 = scalar_lea.sflag [#allocation3], %s198
        %s200 = sand.u32 %s44, 1
        %s201 = smul.addr %s200, 8
        %s202 = scalar_lea.vmem [#allocation2], %s201
        %p203 = pneg %p57
        %p204 = pneg %p54
        %s205 = sand.u32 %s72, 1
        %s206 = scalar_lea.sflag [#allocation6], %s205
        %s207 = sand.u32 %s72, 1
        %s208 = smul.addr %s207, 2
        %s209 = scalar_lea.vmem [#allocation5], %s208
        %p210 = pneg %p85
        %p211 = pneg %p82
        %p212 = pneg %p113
        %p213 = pneg %p110
        %s214 = sand.u32 %s100, 1
        %s215 = scalar_lea.sflag [#allocation4], %s214
        %s216 = sand.u32 %s100, 1
        %s217 = scalar_lea.vmem [#allocation7], %s216
        %v218 = vld [vmem:[%s193] sm:$0x3]
        %v219 = vld [vmem:[%s184] sm:$0x3]
        %vm220 = vcmp.eq.s32.totalorder %v218, 0
        %v221 = vsel %vm220, %v219, 0.0
        %s222 = scalar_lea.vmem %s184, 2 [#allocation2]
        %v223 = vld [vmem:[%s222] sm:$0x3]
        %v224 = vmax.f32 %v219, %v223
        %vm225 = vcmp.eq.s32.totalorder %v218, 1
        %v226 = vsel %vm225, %v223, %v221
        %s227 = scalar_lea.vmem %s184, 4 [#allocation2]
        %v228 = vld [vmem:[%s227] sm:$0x3]
        %v229 = vmax.f32 %v224, %v228
        %vm230 = vcmp.eq.s32.totalorder %v218, 2
        %v231 = vsel %vm230, %v228, %v226
        %s232 = scalar_lea.vmem %s184, 6 [#allocation2]
        %v233 = vld [vmem:[%s232] sm:$0x3]
        %v234 = vmax.f32 %v229, %v233
        %vm235 = vcmp.eq.s32.totalorder %v218, 3
        %v236 = vsel %vm235, %v233, %v231
        %v237 = vsub.f32 %v219, %v234
        %v238 = vmul.f32 %v237, 1.442695
        %v239 = vpow.pop %v238
        %v240 = vadd.f32 %v239, 0.0
        %v241 = vsub.f32 %v223, %v234
        %v242 = vmul.f32 %v241, 1.442695
        %v243 = vpow.pop %v242
        %v244 = vadd.f32 %v240, %v243
        %v245 = vsub.f32 %v228, %v234
        %v246 = vmul.f32 %v245, 1.442695
        %v247 = vpow.pop %v246
        %v248 = vadd.f32 %v244, %v247
        %v249 = vsub.f32 %v233, %v234
        %v250 = vmul.f32 %v249, 1.442695
        %v251 = vpow.pop %v250
        %v252 = vadd.f32 %v248, %v251
        %v253 = vlog2.pop %v252
        %v254 = vmul.f32 %v253, 0.6931472
        %v255 = vadd.f32 %v254, %v234
        %v256 = vsub.f32 %v255, %v236
        %vm257 = vcmp.eq.f32.partialorder %v236, %v234
        %v258 = vsel %vm257, 1, 0
        %v259 = vcvt.s32.f32 %v258
        %vm260 = vcmask 1041408
        %v261 = vsel %vm260, %v256, 0.0
        %262 = vadd.xlane.f32.xlu0 %v261
        %v263 = vpop.xlane.xlu0 %262
        %v264 = vrot.slane %v263, 4
        %v265 = vadd.f32 %v263, %v264
        %v266 = vrot.slane %v265, 2
        %v267 = vadd.f32 %v265, %v266
        %v268 = vrot.slane %v267, 1
        %v269 = vadd.f32 %v267, %v268
        %s270 = vtos %v269
        %v271 = vsel %vm260, %v259, 0.0
        %272 = vadd.xlane.f32.xlu0 %v271
        %v273 = vpop.xlane.xlu0 %272
        %v274 = vrot.slane %v273, 4
        %v275 = vadd.f32 %v273, %v274
        %v276 = vrot.slane %v275, 2
        %v277 = vadd.f32 %v275, %v276
        %v278 = vrot.slane %v277, 1
        %v279 = vadd.f32 %v277, %v278
        %s280 = vtos %v279
        %v281 = vlaneseq
        %v282 = vand.u32 %v281, 127
        %vm283 = vcmp.eq.s32.totalorder %v282, 0
        %v284 = vstv %s270
        %v285 = vstv %s280
        %v286 = vsel %vm283, %v284, %v285
        %vm287 = vcmask 8192
        %288 = vst.msk [vmem:[%s217] sm:$0x1] %vm287, %v286
        %s289 = sand.u32 %s100, 1
        %s290 = scalar_lea.sflag [#allocation4], %s289
        %s291 = sand.u32 %s100, 1
        %s292 = scalar_lea.vmem [#allocation7], %s291
        // Predicated region
        $region37: #{tpu_custom_call.1} parent=27 // pred_check
          %p293 = pneg %p110
        $region38: #{tpu_custom_call.1} parent=27 // pred_check_branch
          %295 = sbr.rel (%p293) target = $region40
        $region39: #{tpu_custom_call.1} parent=27 // pred_region
          %s297 = ssub.s32 16, 16
          %298 = vsyncadd %s290, %s297
          %s299 = sadd.s32 %s27, %s26
          %s300 = smul.addr %s299, 16
          %s301 = scalar_lea.hbm %s2, %s300
          %s303 = sshll.u32 %s292, 4
          %s304 = int_to_ptr.vmem [resolvable:$true] %s303
          %306 = dma.vmem_to_hbm [thread:$0]  %s304, 16, %s301, %s290
        $region40: #{tpu_custom_call.1} parent=27 // pred_fallthru
          _
      $region28: #{tpu_custom_call.1} parent=5 // pred_fallthru
        _
      %p307 = scmp.le.s32.totalorder 2, %s17
      // Predicated region
      $region41: #{tpu_custom_call.1} parent=5 // pred_check
        %p308 = pneg %p307
      $region42: #{tpu_custom_call.1} parent=5 // pred_check_branch
        %310 = sbr.rel (%p308) target = $region44
      $region43: #{tpu_custom_call.1} parent=5 // pred_region
        %s311 = ssub.s32 %s17, 2
        // Predicated region
        $region45: #{tpu_custom_call.1} parent=43 // pred_check
          %p312 = pneg %p116
        $region46: #{tpu_custom_call.1} parent=43 // pred_check_branch
          %314 = sbr.rel (%p312) target = $region48
        $region47: #{tpu_custom_call.1} parent=43 // pred_region
          %s315 = sand.u32 %s101, 1
          %s316 = scalar_lea.sflag [#allocation4], %s315
          %s317 = sand.u32 %s101, 1
          %s318 = scalar_lea.vmem [#allocation7], %s317
          %319 = dma.done %s316, 16
        $region48: #{tpu_custom_call.1} parent=43 // pred_fallthru
          _
      $region44: #{tpu_custom_call.1} parent=5 // pred_fallthru
        _
    $region6: #{tpu_custom_call.1} parent=1 // loop_footer
      %s21 = sadd.s32 1, %s17
    $region7: #{tpu_custom_call.1} parent=1 // loop_footer_branch
      %16 = sbr.rel target = $region3
    $region8: #{tpu_custom_call.1} parent=1 // loop_exit
      _
    %320 = vsyncpa [#allocation3], 1
    %s321 = scalar_lea.sflag [#allocation3], 1
    %322 = vsyncpa %s321, 1
    %323 = vsyncpa [#allocation6], 1
    %s324 = scalar_lea.sflag [#allocation6], 1
    %325 = vsyncpa %s324, 1
    %326 = vsyncpa [#allocation4], 1
    %s327 = scalar_lea.sflag [#allocation4], 1
    %328 = vsyncpa %s327, 1

</llo_original>
